<compile_context>
chip_gen: v7x
topology: tpu7x:2x2x1
jax: 0.10.0
libtpu: 0.0.40
codegen_flags: <defaults>
</compile_context>

<pallas_src>
import jax
import jax.numpy as jnp
import numpy as np
from jax.experimental import pallas as pl
from jax.experimental.pallas import tpu as pltpu

_BN_EPS = 1e-5
_VMEM_LIMIT = 32 * 1024 * 1024   # > v5e's 16 MiB scoped default, <= v6e/v7x budgets
_MAX_ROW_TILE = 512              # mem-bound sweet spot (~85% HBM roofline vs ~29% at 128)


# ------------------------------ Pallas kernels ------------------------------

def _conv1x1_kernel(x_ref, w_ref, b_ref, o_ref):
    # x:(TM,Cin)  w:(Cin,Cout) bf16 (scale pre-folded)  b:(1,Cout) f32
    y = jnp.dot(x_ref[...].astype(jnp.bfloat16), w_ref[...],
                preferred_element_type=jnp.float32)
    o_ref[...] = (y + b_ref[...]).astype(o_ref.dtype)


def _conv1x1_add_relu_kernel(x_ref, w_ref, b_ref, r_ref, o_ref):
    # Final 1x1 conv of a Bottleneck, fused with residual add + ReLU.
    y = jnp.dot(x_ref[...].astype(jnp.bfloat16), w_ref[...],
                preferred_element_type=jnp.float32)
    y = y + b_ref[...] + r_ref[...].astype(jnp.float32)
    o_ref[...] = jnp.maximum(y, 0.0).astype(o_ref.dtype)


def _make_conv3x3_kernel(stride, Ho, Wo, Cin, Cout):
    """3x3 conv (padding=1) processing one image per grid step.

    Inputs are the stride*stride spatial-parity phases of the padded image, so
    each of the 9 taps is a unit-stride (Ho, Wo, Cin) window of one phase.
    All tap weights are resident as a single (9, Cin, Cout) block; the tap loop
    is unrolled and accumulates in f32 (bf16 MXU inputs).
    """
    nph = stride * stride

    def kernel(*refs):
        phase_refs = refs[:nph]
        w_ref, b_ref, o_ref = refs[nph], refs[nph + 1], refs[nph + 2]
        acc = jnp.zeros((Ho * Wo, Cout), jnp.float32)
        for ky in range(3):
            for kx in range(3):
                pr = phase_refs[(ky % stride) * stride + (kx % stride)]
                win = pr[pl.ds(ky // stride, Ho), pl.ds(kx // stride, Wo), :]
                acc = acc + jnp.dot(
                    win.reshape(Ho * Wo, Cin).astype(jnp.bfloat16),
                    w_ref[ky * 3 + kx],
                    preferred_element_type=jnp.float32)
        o_ref[...] = (acc + b_ref[...]).reshape(Ho, Wo, Cout).astype(o_ref.dtype)

    return kernel


# ------------------------------ Kernel wrappers ------------------------------

def _compiler_params():
    return pltpu.CompilerParams(dimension_semantics=("parallel",),
                                vmem_limit_bytes=_VMEM_LIMIT)


def _row_tile(m):
    # Largest power-of-two tile up to _MAX_ROW_TILE; rows are padded up to a
    # multiple of it (never a single full-M block).
    return min(_MAX_ROW_TILE, pl.next_power_of_2(max(m, 8)))


def _pad_rows(a2d, m_pad):
    m = a2d.shape[0]
    return a2d if m_pad == m else jnp.pad(a2d, ((0, m_pad - m), (0, 0)))


def conv1x1_affine(x_nhwc, w, bias, stride=1, residual=None,
                   out_dtype=jnp.float32):
    """1x1 conv (no bias, norm scale pre-folded into w) + bias; optionally
    fused residual add + ReLU. 1x1 conv with stride s == subsample then conv."""
    if stride > 1:
        x_nhwc = x_nhwc[:, ::stride, ::stride, :]
    N, H, W, Cin = x_nhwc.shape
    Cout = w.shape[1]
    M = N * H * W
    TM = _row_tile(M)
    M_pad = pl.cdiv(M, TM) * TM   # NOTE(v7x): even M_pad//TM balances the 2 TCs
    x2d = _pad_rows(x_nhwc.reshape(M, Cin), M_pad)
    grid = (M_pad // TM,)

    in_specs = [
        pl.BlockSpec((TM, Cin), lambda i: (i, 0)),
        pl.BlockSpec((Cin, Cout), lambda i: (0, 0)),    # resident weights
        pl.BlockSpec((1, Cout), lambda i: (0, 0)),
    ]
    out_spec = pl.BlockSpec((TM, Cout), lambda i: (i, 0))
    out_shape = jax.ShapeDtypeStruct((M_pad, Cout), out_dtype)

    if residual is None:
        y = pl.pallas_call(
            _conv1x1_kernel, grid=grid, in_specs=in_specs,
            out_specs=out_spec, out_shape=out_shape,
            compiler_params=_compiler_params(),
        )(x2d, w, bias)
    else:
        r2d = _pad_rows(residual.reshape(M, Cout), M_pad)
        y = pl.pallas_call(
            _conv1x1_add_relu_kernel, grid=grid,
            in_specs=in_specs + [pl.BlockSpec((TM, Cout), lambda i: (i, 0))],
            out_specs=out_spec, out_shape=out_shape,
            compiler_params=_compiler_params(),
        )(x2d, w, bias, r2d)
    return y[:M].reshape(N, H, W, Cout)


def conv3x3_affine(x_nhwc, w9, bias, stride, out_dtype=jnp.bfloat16):
    """3x3 conv (padding=1, no bias, norm scale pre-folded into w9) + bias.

    Stride is applied inside the conv (GEMMs are output-sized). The padded
    input is split into stride*stride parity phases (total data = 1x) so no
    shifted im2col copies are materialized and every in-kernel tap window is a
    unit-stride slice.
    """
    N, H, W, Cin = x_nhwc.shape
    Cout = w9.shape[-1]
    s = stride
    Ho = (H - 1) // s + 1
    Wo = (W - 1) // s + 1
    xp = jnp.pad(x_nhwc, ((0, 0), (1, 1), (1, 1), (0, 0)))
    phases = [xp[:, py::s, px::s, :] for py in range(s) for px in range(s)]

    in_specs = []
    for ph in phases:
        _, hp, wp, _ = ph.shape
        in_specs.append(
            pl.BlockSpec((None, hp, wp, Cin), lambda n: (n, 0, 0, 0)))
    in_specs += [
        pl.BlockSpec((9, Cin, Cout), lambda n: (0, 0, 0)),  # resident tap weights
        pl.BlockSpec((1, Cout), lambda n: (0, 0)),
    ]

    # TODO(synk): row-tile the image (with halo DMA) for spatial extents whose
    # per-image working set would not fit VMEM; all ResNet-50 stages fit easily.
    return pl.pallas_call(
        _make_conv3x3_kernel(s, Ho, Wo, Cin, Cout),
        grid=(N,), in_specs=in_specs,
        out_specs=pl.BlockSpec((None, Ho, Wo, Cout), lambda n: (n, 0, 0, 0)),
        out_shape=jax.ShapeDtypeStruct((N, Ho, Wo, Cout), out_dtype),
        compiler_params=_compiler_params(),
    )(*phases, w9, bias)


# ------------------------------ Model (glue) ------------------------------

def bottleneck_forward(x_nhwc, p):
    # Spec Bottleneck: conv1/norm -> conv3x3/norm -> conv1/norm, then
    # relu(out + downsample(x)). No intermediate ReLUs (per the spec module).
    ds = p['downsample_by']
    stride = 1 if ds is None else ds
    h = conv1x1_affine(x_nhwc, p['w1'], p['b1'], out_dtype=jnp.bfloat16)
    h = conv3x3_affine(h, p['w2'], p['b2'], stride, out_dtype=jnp.bfloat16)
    if ds is None:
        res = x_nhwc                                   # torch.nn.Identity()
    else:
        res = conv1x1_affine(x_nhwc, p['wd'], p['bd'], stride=stride,
                             out_dtype=jnp.float32)
    # TODO(synk): fuse the full 1x1 -> 3x3 -> 1x1 chain into one pallas_call per
    # block so `h` never round-trips through HBM.
    # TODO(synk): pad/pack channels to a 128-lane multiple for lane-dense
    # stores at small channel widths (demo Cout=8/16); real ResNet widths are fine.
    return conv1x1_affine(h, p['w3'], p['b3'], residual=res,
                          out_dtype=jnp.float32)


def resnet_layer_forward(x_nchw, params):
    # layout: NCHW in/out, NHWC inside the kernels.
    x = jnp.transpose(x_nchw, (0, 2, 3, 1)).astype(jnp.float32)
    for p in params:
        x = bottleneck_forward(x, p)
    return jnp.transpose(x, (0, 3, 1, 2))


# ------------------------------ Parameter init ------------------------------

def _identity_affine(c):
    return jnp.ones((1, c), jnp.float32), jnp.zeros((1, c), jnp.float32)


def _batchnorm_eval_affine(c):
    # Freshly-initialized torch.nn.BatchNorm2d in eval(): weight=1, bias=0,
    # running_mean=0, running_var=1  ->  y = x / sqrt(1 + eps).
    scale = jnp.full((1, c), 1.0 / np.sqrt(1.0 + _BN_EPS), jnp.float32)
    return scale, jnp.zeros((1, c), jnp.float32)


def init_resnet_layer_params(key, in_planes, hid_planes, out_planes,
                             num_blocks, downsample_by, conv_groups=1):
    # TODO(synk): grouped 3x3 conv (conv_groups > 1) not implemented.
    # TODO(synk): train-mode BatchNorm (batch statistics) not implemented;
    #             eval-mode BN is folded into the conv weights / bias below.
    assert conv_groups == 1
    params = []
    for blk in range(num_blocks):
        cin = in_planes if blk == 0 else out_planes
        ds = downsample_by if blk == 0 else None
        # Block 0 uses ResNetLayer's norm (default Identity); remaining blocks
        # use Bottleneck.Config's default norm (BatchNorm2d, eval mode).
        affine = _identity_affine if blk == 0 else _batchnorm_eval_affine
        key, k1, k2, k3, kd = jax.random.split(key, 5)
        # torch Conv2d weights are (Cout, Cin, kh, kw).
        w1 = jax.random.normal(k1, (hid_planes, cin, 1, 1), jnp.float32) * 0.1
        w2 = jax.random.normal(k2, (hid_planes, hid_planes, 3, 3), jnp.float32) * 0.1
        w3 = jax.random.normal(k3, (out_planes, hid_planes, 1, 1), jnp.float32) * 0.1
        s1, b1 = affine(hid_planes)
        s2, b2 = affine(hid_planes)
        s3, b3 = affine(out_planes)
        p = {
            # Per-channel norm scale folded into the conv weights; bf16 weights.
            'w1': (jnp.transpose(w1[:, :, 0, 0], (1, 0)) * s1).astype(jnp.bfloat16),
            'w2': (jnp.transpose(w2, (2, 3, 1, 0)).reshape(9, hid_planes, hid_planes)
                   * s2).astype(jnp.bfloat16),
            'w3': (jnp.transpose(w3[:, :, 0, 0], (1, 0)) * s3).astype(jnp.bfloat16),
            'b1': b1, 'b2': b2, 'b3': b3,
            'downsample_by': ds,
        }
        if ds is not None:
            wd = jax.random.normal(kd, (out_planes, cin, 1, 1), jnp.float32) * 0.1
            sd, bd = affine(out_planes)
            p['wd'] = (jnp.transpose(wd[:, :, 0, 0], (1, 0)) * sd).astype(jnp.bfloat16)
            p['bd'] = bd
        params.append(p)
    return params


# ------------------------------ Pure-JAX reference ------------------------------

def _ref_conv(x, w_hwio, stride, pad):
    # Mirrors kernel precision: bf16 matmul inputs, f32 accumulation.
    return jax.lax.conv_general_dilated(
        x.astype(jnp.bfloat16), w_hwio.astype(jnp.bfloat16),
        (stride, stride), ((pad, pad), (pad, pad)),
        dimension_numbers=('NHWC', 'HWIO', 'NHWC'),
        preferred_element_type=jnp.float32)


def ref_forward(x_nchw, params):
    x = jnp.transpose(x_nchw, (0, 2, 3, 1)).astype(jnp.float32)
    for p in params:
        ds = p['downsample_by']
        s = 1 if ds is None else ds
        k2 = p['w2'].reshape(3, 3, p['w2'].shape[1], p['w2'].shape[2])
        h = _ref_conv(x, p['w1'][None, None], 1, 0) + p['b1']
        h = h.astype(jnp.bfloat16).astype(jnp.float32)   # kernel stores h1 in bf16
        h = _ref_conv(h, k2, s, 1) + p['b2']
        h = h.astype(jnp.bfloat16).astype(jnp.float32)   # kernel stores h2 in bf16
        h = _ref_conv(h, p['w3'][None, None], 1, 0) + p['b3']
        r = x if ds is None else (
            _ref_conv(x, p['wd'][None, None], s, 0) + p['bd'])
        x = jnp.maximum(h + r, 0.0)
    return jnp.transpose(x, (0, 3, 1, 2))


# ------------------------------ Demo ------------------------------

if __name__ == "__main__":
    key = jax.random.PRNGKey(0)
    kx, kp = jax.random.split(key)

    # ResNetLayer.Config(in_planes=8, hid_planes=8, out_planes=16,
    #                    num_blocks=2, downsample_by=2, conv_groups=1,
    #                    norm=Identity)
    N, IN, H, W = 2, 8, 16, 16
    HID, OUT, NUM_BLOCKS, DOWNSAMPLE = 8, 16, 2, 2

    x = jax.random.normal(kx, (N, IN, H, W), jnp.float32)   # NCHW, like PyTorch
    params = init_resnet_layer_params(kp, IN, HID, OUT, NUM_BLOCKS, DOWNSAMPLE)

    out = jax.block_until_ready(resnet_layer_forward(x, params))
    assert out.shape == (N, OUT, H // DOWNSAMPLE, W // DOWNSAMPLE), out.shape

    ref = jax.block_until_ready(ref_forward(x, params))
    np.testing.assert_allclose(np.asarray(out), np.asarray(ref),
                               rtol=1e-2, atol=2e-3)
    print("KERNEL_OK")
</pallas_src>

<mosaic_0001>
module attributes {stable_mosaic.version = 11 : i64} {
  func.func @_conv1x1_kernel(%arg0: i32, %arg1: memref<512x8xf32, #tpu.memory_space<vmem>>, %arg2: memref<8x8xbf16, #tpu.memory_space<vmem>>, %arg3: memref<1x8xf32, #tpu.memory_space<vmem>>, %arg4: memref<512x8xbf16, #tpu.memory_space<vmem>>) attributes {dimension_semantics = [#tpu.dimension_semantics<parallel>], iteration_bounds = array<i64: 1>, scalar_prefetch = 0 : i64, scratch_operands = 0 : i64, tpu.core_type = #tpu.core_type<tc>, window_params = [{transform_indices = @transform_0, window_bounds = array<i64: 512, 8>}, {pipeline_mode = #tpu.pipeline_mode<synchronous>, transform_indices = @transform_1, window_bounds = array<i64: 8, 8>}, {pipeline_mode = #tpu.pipeline_mode<synchronous>, transform_indices = @transform_2, window_bounds = array<i64: 1, 8>}, {transform_indices = @transform_3, window_bounds = array<i64: 512, 8>}]} {
    %c0 = arith.constant 0 : index
    %c0_0 = arith.constant 0 : index
    %0 = vector.load %arg1[%c0, %c0_0] : memref<512x8xf32, #tpu.memory_space<vmem>>, vector<512x8xf32>
    %1 = arith.truncf %0 : vector<512x8xf32> to vector<512x8xbf16>
    %c0_1 = arith.constant 0 : index
    %c0_2 = arith.constant 0 : index
    %2 = vector.load %arg2[%c0_1, %c0_2] : memref<8x8xbf16, #tpu.memory_space<vmem>>, vector<8x8xbf16>
    %cst = arith.constant dense<0.000000e+00> : vector<512x8xf32>
    %3 = tpu.matmul %1, %2, %cst {dimension_numbers = #tpu.dot_dimension_numbers<[1], [0], [0], [1], [0, 0, 1, 1], [], []>} : vector<512x8xbf16>, vector<8x8xbf16>, vector<512x8xf32> -> vector<512x8xf32>
    %c0_3 = arith.constant 0 : index
    %c0_4 = arith.constant 0 : index
    %4 = vector.load %arg3[%c0_3, %c0_4] : memref<1x8xf32, #tpu.memory_space<vmem>>, vector<1x8xf32>
    %5 = vector.broadcast %4 : vector<1x8xf32> to vector<512x8xf32>
    %6 = arith.addf %3, %5 : vector<512x8xf32>
    %7 = arith.truncf %6 : vector<512x8xf32> to vector<512x8xbf16>
    %c0_5 = arith.constant 0 : index
    %c0_6 = arith.constant 0 : index
    %8 = vector.load %arg4[%c0_5, %c0_6] : memref<512x8xbf16, #tpu.memory_space<vmem>>, vector<512x8xbf16>
    tpu.vector_store %arg4[%c0_5, %c0_6], %7 {strides = array<i32>} : memref<512x8xbf16, #tpu.memory_space<vmem>>, vector<512x8xbf16>,
    return
  }
  func.func @transform_0(%arg0: i32) -> (i32, i32) {
    %c0_i32 = arith.constant 0 : i32
    %c0_i32_0 = arith.constant 0 : i32
    return %arg0, %c0_i32 : i32, i32
  }
  func.func @transform_1(%arg0: i32) -> (i32, i32) {
    %c0_i32 = arith.constant 0 : i32
    %c0_i32_0 = arith.constant 0 : i32
    %c0_i32_1 = arith.constant 0 : i32
    return %c0_i32, %c0_i32_0 : i32, i32
  }
  func.func @transform_2(%arg0: i32) -> (i32, i32) {
    %c0_i32 = arith.constant 0 : i32
    %c0_i32_0 = arith.constant 0 : i32
    %c0_i32_1 = arith.constant 0 : i32
    return %c0_i32, %c0_i32_0 : i32, i32
  }
  func.func @transform_3(%arg0: i32) -> (i32, i32) {
    %c0_i32 = arith.constant 0 : i32
    %c0_i32_0 = arith.constant 0 : i32
    return %arg0, %c0_i32 : i32, i32
  }
}

</mosaic_0001>

<llo_original>
// kernel: tpu_custom_call.1
$region0: #{tpu_custom_call.1}
  #allocation0 [shape = 'u32[]', space=smem, size = 0x4, offset = 0x4, fixed_abs, tag = 'smem constant byte address 0x4 - core index']
  #allocation1 [shape = 'u32[144,128]{1,0:T(1,128)}', space=vmem, size = 0x12000, scoped, tag = 'internal scratch']
  %s0 = inlined_call_operand.vmem [shape: f32[512,8], index: 0, kind: input, shape index: {}]
  %s1 = inlined_call_operand.vmem [shape: bf16[8,8], index: 1, kind: input, shape index: {}]
  %s2 = inlined_call_operand.vmem [shape: f32[1,8], index: 2, kind: input, shape index: {}]
  %s3 = inlined_call_operand.vmem [shape: bf16[512,8], index: 3, kind: output, shape index: {}]
  %s4 = sld [smem:[#allocation0]]
  $region22: #{tpu_custom_call.1} parent=0
    _
  %s6 = ssub.s32 1, %s4
  %s7 = scalar_select 0, %s6, %s4
  // Predicated region
  $region2: #{tpu_custom_call.1} parent=0 // pred_check
    _
  $region3: #{tpu_custom_call.1} parent=0 // pred_check_branch
    %9 = sbr.rel (0) target = $region5
  $region4: #{tpu_custom_call.1} parent=0 // pred_region
    _
  $region5: #{tpu_custom_call.1} parent=0 // pred_fallthru
    _
  // Predicated region
  $region6: #{tpu_custom_call.1} parent=0 // pred_check
    _
  $region7: #{tpu_custom_call.1} parent=0 // pred_check_branch
    %11 = sbr.rel (0) target = $region9
  $region8: #{tpu_custom_call.1} parent=0 // pred_region
    _
  $region9: #{tpu_custom_call.1} parent=0 // pred_fallthru
    _
  // Predicated region
  $region10: #{tpu_custom_call.1} parent=0 // pred_check
    _
  $region11: #{tpu_custom_call.1} parent=0 // pred_check_branch
    %13 = sbr.rel (0) target = $region13
  $region12: #{tpu_custom_call.1} parent=0 // pred_region
    _
  $region13: #{tpu_custom_call.1} parent=0 // pred_fallthru
    _
  %v15 = vld [vmem:[%s0] sm:$0xff]
  %v16 = vld [vmem:[%s0 + $0x8] sm:$0xff]
  %v17 = vld [vmem:[%s0 + $0x10] sm:$0xff]
  %v18 = vld [vmem:[%s0 + $0x18] sm:$0xff]
  %v19 = vld [vmem:[%s0 + $0x20] sm:$0xff]
  %v20 = vld [vmem:[%s0 + $0x28] sm:$0xff]
  %v21 = vld [vmem:[%s0 + $0x30] sm:$0xff]
  %v22 = vld [vmem:[%s0 + $0x38] sm:$0xff]
  %v23 = vld [vmem:[%s0 + $0x40] sm:$0xff]
  %v24 = vld [vmem:[%s0 + $0x48] sm:$0xff]
  %v25 = vld [vmem:[%s0 + $0x50] sm:$0xff]
  %v26 = vld [vmem:[%s0 + $0x58] sm:$0xff]
  %v27 = vld [vmem:[%s0 + $0x60] sm:$0xff]
  %v28 = vld [vmem:[%s0 + $0x68] sm:$0xff]
  %v29 = vld [vmem:[%s0 + $0x70] sm:$0xff]
  %v30 = vld [vmem:[%s0 + $0x78] sm:$0xff]
  %v31 = vld [vmem:[%s0 + $0x80] sm:$0xff]
  %v32 = vld [vmem:[%s0 + $0x88] sm:$0xff]
  %v33 = vld [vmem:[%s0 + $0x90] sm:$0xff]
  %v34 = vld [vmem:[%s0 + $0x98] sm:$0xff]
  %v35 = vld [vmem:[%s0 + $0xa0] sm:$0xff]
  %v36 = vld [vmem:[%s0 + $0xa8] sm:$0xff]
  %v37 = vld [vmem:[%s0 + $0xb0] sm:$0xff]
  %v38 = vld [vmem:[%s0 + $0xb8] sm:$0xff]
  %v39 = vld [vmem:[%s0 + $0xc0] sm:$0xff]
  %v40 = vld [vmem:[%s0 + $0xc8] sm:$0xff]
  %v41 = vld [vmem:[%s0 + $0xd0] sm:$0xff]
  %v42 = vld [vmem:[%s0 + $0xd8] sm:$0xff]
  %v43 = vld [vmem:[%s0 + $0xe0] sm:$0xff]
  %v44 = vld [vmem:[%s0 + $0xe8] sm:$0xff]
  %v45 = vld [vmem:[%s0 + $0xf0] sm:$0xff]
  %v46 = vld [vmem:[%s0 + $0xf8] sm:$0xff]
  %v47 = vld [vmem:[%s0 + $0x100] sm:$0xff]
  %v48 = vld [vmem:[%s0 + $0x108] sm:$0xff]
  %v49 = vld [vmem:[%s0 + $0x110] sm:$0xff]
  %v50 = vld [vmem:[%s0 + $0x118] sm:$0xff]
  %v51 = vld [vmem:[%s0 + $0x120] sm:$0xff]
  %v52 = vld [vmem:[%s0 + $0x128] sm:$0xff]
  %v53 = vld [vmem:[%s0 + $0x130] sm:$0xff]
  %v54 = vld [vmem:[%s0 + $0x138] sm:$0xff]
  %v55 = vld [vmem:[%s0 + $0x140] sm:$0xff]
  %v56 = vld [vmem:[%s0 + $0x148] sm:$0xff]
  %v57 = vld [vmem:[%s0 + $0x150] sm:$0xff]
  %v58 = vld [vmem:[%s0 + $0x158] sm:$0xff]
  %v59 = vld [vmem:[%s0 + $0x160] sm:$0xff]
  %v60 = vld [vmem:[%s0 + $0x168] sm:$0xff]
  %v61 = vld [vmem:[%s0 + $0x170] sm:$0xff]
  %v62 = vld [vmem:[%s0 + $0x178] sm:$0xff]
  %v63 = vld [vmem:[%s0 + $0x180] sm:$0xff]
  %v64 = vld [vmem:[%s0 + $0x188] sm:$0xff]
  %v65 = vld [vmem:[%s0 + $0x190] sm:$0xff]
  %v66 = vld [vmem:[%s0 + $0x198] sm:$0xff]
  %v67 = vld [vmem:[%s0 + $0x1a0] sm:$0xff]
  %v68 = vld [vmem:[%s0 + $0x1a8] sm:$0xff]
  %v69 = vld [vmem:[%s0 + $0x1b0] sm:$0xff]
  %v70 = vld [vmem:[%s0 + $0x1b8] sm:$0xff]
  %v71 = vld [vmem:[%s0 + $0x1c0] sm:$0xff]
  %v72 = vld [vmem:[%s0 + $0x1c8] sm:$0xff]
  %v73 = vld [vmem:[%s0 + $0x1d0] sm:$0xff]
  %v74 = vld [vmem:[%s0 + $0x1d8] sm:$0xff]
  %v75 = vld [vmem:[%s0 + $0x1e0] sm:$0xff]
  %v76 = vld [vmem:[%s0 + $0x1e8] sm:$0xff]
  %v77 = vld [vmem:[%s0 + $0x1f0] sm:$0xff]
  %v78 = vld [vmem:[%s0 + $0x1f8] sm:$0xff]
  %v79 = vpack.c.bf16 %v16, %v15
  %v80 = vpack.c.bf16 %v18, %v17
  %v81 = vpack.c.bf16 %v20, %v19
  %v82 = vpack.c.bf16 %v22, %v21
  %v83 = vpack.c.bf16 %v24, %v23
  %v84 = vpack.c.bf16 %v26, %v25
  %v85 = vpack.c.bf16 %v28, %v27
  %v86 = vpack.c.bf16 %v30, %v29
  %v87 = vpack.c.bf16 %v32, %v31
  %v88 = vpack.c.bf16 %v34, %v33
  %v89 = vpack.c.bf16 %v36, %v35
  %v90 = vpack.c.bf16 %v38, %v37
  %v91 = vpack.c.bf16 %v40, %v39
  %v92 = vpack.c.bf16 %v42, %v41
  %v93 = vpack.c.bf16 %v44, %v43
  %v94 = vpack.c.bf16 %v46, %v45
  %v95 = vpack.c.bf16 %v48, %v47
  %v96 = vpack.c.bf16 %v50, %v49
  %v97 = vpack.c.bf16 %v52, %v51
  %v98 = vpack.c.bf16 %v54, %v53
  %v99 = vpack.c.bf16 %v56, %v55
  %v100 = vpack.c.bf16 %v58, %v57
  %v101 = vpack.c.bf16 %v60, %v59
  %v102 = vpack.c.bf16 %v62, %v61
  %v103 = vpack.c.bf16 %v64, %v63
  %v104 = vpack.c.bf16 %v66, %v65
  %v105 = vpack.c.bf16 %v68, %v67
  %v106 = vpack.c.bf16 %v70, %v69
  %v107 = vpack.c.bf16 %v72, %v71
  %v108 = vpack.c.bf16 %v74, %v73
  %v109 = vpack.c.bf16 %v76, %v75
  %v110 = vpack.c.bf16 %v78, %v77
  %v111 = vld [vmem:[%s1] sm:$0xf]
  %v112 = vld [vmem:[%s2] sm:$0x1]
  %v114 = vlaneseq
  %v115 = vshrl.u32 %v114, 7
  %v116 = vsub.s32 0, %v115
  %v117 = vrot.slane %v112, %v116
  %vm119 = vcmask 64512
  %v121 = vsel %vm119, %v79, 0
  %v124 = vsel %vm119, %v80, 0
  %v127 = vsel %vm119, %v81, 0
  %v130 = vsel %vm119, %v82, 0
  %v133 = vsel %vm119, %v83, 0
  %v136 = vsel %vm119, %v84, 0
  %v139 = vsel %vm119, %v85, 0
  %v142 = vsel %vm119, %v86, 0
  %v145 = vsel %vm119, %v87, 0
  %v148 = vsel %vm119, %v88, 0
  %v151 = vsel %vm119, %v89, 0
  %v154 = vsel %vm119, %v90, 0
  %v157 = vsel %vm119, %v91, 0
  %v160 = vsel %vm119, %v92, 0
  %v163 = vsel %vm119, %v93, 0
  %v166 = vsel %vm119, %v94, 0
  %v169 = vsel %vm119, %v95, 0
  %v172 = vsel %vm119, %v96, 0
  %v175 = vsel %vm119, %v97, 0
  %v178 = vsel %vm119, %v98, 0
  %v181 = vsel %vm119, %v99, 0
  %v184 = vsel %vm119, %v100, 0
  %v187 = vsel %vm119, %v101, 0
  %v190 = vsel %vm119, %v102, 0
  %v193 = vsel %vm119, %v103, 0
  %v196 = vsel %vm119, %v104, 0
  %v199 = vsel %vm119, %v105, 0
  %v202 = vsel %vm119, %v106, 0
  %v205 = vsel %vm119, %v107, 0
  %v208 = vsel %vm119, %v108, 0
  %v211 = vsel %vm119, %v109, 0
  %v214 = vsel %vm119, %v110, 0
  %vm216 = vcmask 1043456
  %v218 = vsel %vm216, %v111, 0
  %220 = vmatprep.subr.bf16.mxu0 0
  %221 = vmatpush1.bf16.msra.mxu0 %v218
  %222 = vmatprep.subr.bf16.mxu0 0
  %223 = vmatpush1.bf16.msra.mxu0 0
  %224 = vmatprep.subr.bf16.mxu0 0
  %225 = vmatpush1.bf16.msra.mxu0 0
  %226 = vmatprep.subr.bf16.mxu0 0
  %227 = vmatpush1.bf16.msra.mxu0 0
  %228 = vmatprep.subr.bf16.mxu0 0
  %229 = vmatpush1.bf16.msra.mxu0 0
  %230 = vmatprep.subr.bf16.mxu0 0
  %231 = vmatpush1.bf16.msra.mxu0 0
  %232 = vmatprep.subr.bf16.mxu0 0
  %233 = vmatpush1.bf16.msra.mxu0 0
  %234 = vmatprep.subr.bf16.mxu0 0
  %235 = vmatpush1.bf16.msra.mxu0 0
  %236 = vmatprep.subr.bf16.mxu0 0
  %237 = vmatpush1.bf16.msra.mxu0 0
  %238 = vmatprep.subr.bf16.mxu0 0
  %239 = vmatpush1.bf16.msra.mxu0 0
  %240 = vmatprep.subr.bf16.mxu0 0
  %241 = vmatpush1.bf16.msra.mxu0 0
  %242 = vmatprep.subr.bf16.mxu0 0
  %243 = vmatpush1.bf16.msra.mxu0 0
  %244 = vmatprep.subr.bf16.mxu0 0
  %245 = vmatpush1.bf16.msra.mxu0 0
  %246 = vmatprep.subr.bf16.mxu0 0
  %247 = vmatpush1.bf16.msra.mxu0 0
  %248 = vmatprep.subr.bf16.mxu0 0
  %249 = vmatpush1.bf16.msra.mxu0 0
  %250 = vmatprep.subr.bf16.mxu0 0
  %251 = vmatpush1.bf16.msra.mxu0 0
  %252 = vmatprep.mubr.bf16.mxu0 0
  %253 = vmatmul.mubr.bf16.gmra.mrb[0].mxu0 %v121
  %v254 = vpop.f32.mrb[0].mxu0
  %v255 = vadd.f32 %v117, %v254
  %v256 = vpop.f32.mrb[0].mxu0
  %v257 = vpop.f32.mrb[0].mxu0
  %v258 = vadd.f32 %v117, %v257
  %v259 = vpop.f32.mrb[0].mxu0
  %260 = vmatprep.mubr.bf16.mxu0 0
  %261 = vmatmul.mubr.bf16.gmra.mrb[0].mxu0 %v124
  %v262 = vpop.f32.mrb[0].mxu0
  %v263 = vadd.f32 %v117, %v262
  %v264 = vpop.f32.mrb[0].mxu0
  %v265 = vpop.f32.mrb[0].mxu0
  %v266 = vadd.f32 %v117, %v265
  %v267 = vpop.f32.mrb[0].mxu0
  %268 = vmatprep.mubr.bf16.mxu0 0
  %269 = vmatmul.mubr.bf16.gmra.mrb[0].mxu0 %v127
  %v270 = vpop.f32.mrb[0].mxu0
  %v271 = vadd.f32 %v117, %v270
  %v272 = vpop.f32.mrb[0].mxu0
  %v273 = vpop.f32.mrb[0].mxu0
  %v274 = vadd.f32 %v117, %v273
  %v275 = vpop.f32.mrb[0].mxu0
  %276 = vmatprep.mubr.bf16.mxu0 0
  %277 = vmatmul.mubr.bf16.gmra.mrb[0].mxu0 %v130
  %v278 = vpop.f32.mrb[0].mxu0
  %v279 = vadd.f32 %v117, %v278
  %v280 = vpop.f32.mrb[0].mxu0
  %v281 = vpop.f32.mrb[0].mxu0
  %v282 = vadd.f32 %v117, %v281
  %v283 = vpop.f32.mrb[0].mxu0
  %284 = vmatprep.mubr.bf16.mxu0 0
  %285 = vmatmul.mubr.bf16.gmra.mrb[0].mxu0 %v133
  %v286 = vpop.f32.mrb[0].mxu0
  %v287 = vadd.f32 %v117, %v286
  %v288 = vpop.f32.mrb[0].mxu0
  %v289 = vpop.f32.mrb[0].mxu0
  %v290 = vadd.f32 %v117, %v289
  %v291 = vpop.f32.mrb[0].mxu0
  %292 = vmatprep.mubr.bf16.mxu0 0
  %293 = vmatmul.mubr.bf16.gmra.mrb[0].mxu0 %v136
  %v294 = vpop.f32.mrb[0].mxu0
  %v295 = vadd.f32 %v117, %v294
  %v296 = vpop.f32.mrb[0].mxu0
  %v297 = vpop.f32.mrb[0].mxu0
  %v298 = vadd.f32 %v117, %v297
  %v299 = vpop.f32.mrb[0].mxu0
  %300 = vmatprep.mubr.bf16.mxu0 0
  %301 = vmatmul.mubr.bf16.gmra.mrb[0].mxu0 %v139
  %v302 = vpop.f32.mrb[0].mxu0
  %v303 = vadd.f32 %v117, %v302
  %v304 = vpop.f32.mrb[0].mxu0
  %v305 = vpop.f32.mrb[0].mxu0
  %v306 = vadd.f32 %v117, %v305
  %v307 = vpop.f32.mrb[0].mxu0
  %308 = vmatprep.mubr.bf16.mxu0 0
  %309 = vmatmul.mubr.bf16.gmra.mrb[0].mxu0 %v142
  %v310 = vpop.f32.mrb[0].mxu0
  %v311 = vadd.f32 %v117, %v310
  %v312 = vpop.f32.mrb[0].mxu0
  %v313 = vpop.f32.mrb[0].mxu0
  %v314 = vadd.f32 %v117, %v313
  %v315 = vpop.f32.mrb[0].mxu0
  %316 = vmatprep.mubr.bf16.mxu0 0
  %317 = vmatmul.mubr.bf16.gmra.mrb[0].mxu0 %v145
  %v318 = vpop.f32.mrb[0].mxu0
  %v319 = vadd.f32 %v117, %v318
  %v320 = vpop.f32.mrb[0].mxu0
  %v321 = vpop.f32.mrb[0].mxu0
  %v322 = vadd.f32 %v117, %v321
  %v323 = vpop.f32.mrb[0].mxu0
  %324 = vmatprep.mubr.bf16.mxu0 0
  %325 = vmatmul.mubr.bf16.gmra.mrb[0].mxu0 %v148
  %v326 = vpop.f32.mrb[0].mxu0
  %v327 = vadd.f32 %v117, %v326
  %v328 = vpop.f32.mrb[0].mxu0
  %v329 = vpop.f32.mrb[0].mxu0
  %v330 = vadd.f32 %v117, %v329
  %v331 = vpop.f32.mrb[0].mxu0
  %332 = vmatprep.mubr.bf16.mxu0 0
  %333 = vmatmul.mubr.bf16.gmra.mrb[0].mxu0 %v151
  %v334 = vpop.f32.mrb[0].mxu0
  %v335 = vadd.f32 %v117, %v334
  %v336 = vpop.f32.mrb[0].mxu0
  %v337 = vpop.f32.mrb[0].mxu0
  %v338 = vadd.f32 %v117, %v337
  %v339 = vpop.f32.mrb[0].mxu0
  %340 = vmatprep.mubr.bf16.mxu0 0
  %341 = vmatmul.mubr.bf16.gmra.mrb[0].mxu0 %v154
  %v342 = vpop.f32.mrb[0].mxu0
  %v343 = vadd.f32 %v117, %v342
  %v344 = vpop.f32.mrb[0].mxu0
  %v345 = vpop.f32.mrb[0].mxu0
  %v346 = vadd.f32 %v117, %v345
  %v347 = vpop.f32.mrb[0].mxu0
  %348 = vmatprep.mubr.bf16.mxu0 0
  %349 = vmatmul.mubr.bf16.gmra.mrb[0].mxu0 %v157
  %v350 = vpop.f32.mrb[0].mxu0
  %v351 = vadd.f32 %v117, %v350
  %v352 = vpop.f32.mrb[0].mxu0
  %v353 = vpop.f32.mrb[0].mxu0
  %v354 = vadd.f32 %v117, %v353
  %v355 = vpop.f32.mrb[0].mxu0
  %356 = vmatprep.mubr.bf16.mxu0 0
  %357 = vmatmul.mubr.bf16.gmra.mrb[0].mxu0 %v160
  %v358 = vpop.f32.mrb[0].mxu0
  %v359 = vadd.f32 %v117, %v358
  %v360 = vpop.f32.mrb[0].mxu0
  %v361 = vpop.f32.mrb[0].mxu0
  %v362 = vadd.f32 %v117, %v361
  %v363 = vpop.f32.mrb[0].mxu0
  %364 = vmatprep.mubr.bf16.mxu0 0
  %365 = vmatmul.mubr.bf16.gmra.mrb[0].mxu0 %v163
  %v366 = vpop.f32.mrb[0].mxu0
  %v367 = vadd.f32 %v117, %v366
  %v368 = vpop.f32.mrb[0].mxu0
  %v369 = vpop.f32.mrb[0].mxu0
  %v370 = vadd.f32 %v117, %v369
  %v371 = vpop.f32.mrb[0].mxu0
  %372 = vmatprep.mubr.bf16.mxu0 0
  %373 = vmatmul.mubr.bf16.gmra.mrb[0].mxu0 %v166
  %v374 = vpop.f32.mrb[0].mxu0
  %v375 = vadd.f32 %v117, %v374
  %v376 = vpop.f32.mrb[0].mxu0
  %v377 = vpop.f32.mrb[0].mxu0
  %v378 = vadd.f32 %v117, %v377
  %v379 = vpop.f32.mrb[0].mxu0
  %380 = vmatprep.mubr.bf16.mxu0 0
  %381 = vmatmul.mubr.bf16.gmra.mrb[0].mxu0 %v169
  %v382 = vpop.f32.mrb[0].mxu0
  %v383 = vadd.f32 %v117, %v382
  %v384 = vpop.f32.mrb[0].mxu0
  %v385 = vpop.f32.mrb[0].mxu0
  %v386 = vadd.f32 %v117, %v385
  %v387 = vpop.f32.mrb[0].mxu0
  %388 = vmatprep.mubr.bf16.mxu0 0
  %389 = vmatmul.mubr.bf16.gmra.mrb[0].mxu0 %v172
  %v390 = vpop.f32.mrb[0].mxu0
  %v391 = vadd.f32 %v117, %v390
  %v392 = vpop.f32.mrb[0].mxu0
  %v393 = vpop.f32.mrb[0].mxu0
  %v394 = vadd.f32 %v117, %v393
  %v395 = vpop.f32.mrb[0].mxu0
  %396 = vmatprep.mubr.bf16.mxu0 0
  %397 = vmatmul.mubr.bf16.gmra.mrb[0].mxu0 %v175
  %v398 = vpop.f32.mrb[0].mxu0
  %v399 = vadd.f32 %v117, %v398
  %v400 = vpop.f32.mrb[0].mxu0
  %v401 = vpop.f32.mrb[0].mxu0
  %v402 = vadd.f32 %v117, %v401
  %v403 = vpop.f32.mrb[0].mxu0
  %404 = vmatprep.mubr.bf16.mxu0 0
  %405 = vmatmul.mubr.bf16.gmra.mrb[0].mxu0 %v178
  %v406 = vpop.f32.mrb[0].mxu0
  %v407 = vadd.f32 %v117, %v406
  %v408 = vpop.f32.mrb[0].mxu0
  %v409 = vpop.f32.mrb[0].mxu0
  %v410 = vadd.f32 %v117, %v409
  %v411 = vpop.f32.mrb[0].mxu0
  %412 = vmatprep.mubr.bf16.mxu0 0
  %413 = vmatmul.mubr.bf16.gmra.mrb[0].mxu0 %v181
  %v414 = vpop.f32.mrb[0].mxu0
  %v415 = vadd.f32 %v117, %v414
  %v416 = vpop.f32.mrb[0].mxu0
  %v417 = vpop.f32.mrb[0].mxu0
  %v418 = vadd.f32 %v117, %v417
  %v419 = vpop.f32.mrb[0].mxu0
  %420 = vmatprep.mubr.bf16.mxu0 0
  %421 = vmatmul.mubr.bf16.gmra.mrb[0].mxu0 %v184
  %v422 = vpop.f32.mrb[0].mxu0
  %v423 = vadd.f32 %v117, %v422
  %v424 = vpop.f32.mrb[0].mxu0
  %v425 = vpop.f32.mrb[0].mxu0
  %v426 = vadd.f32 %v117, %v425
  %v427 = vpop.f32.mrb[0].mxu0
  %428 = vmatprep.mubr.bf16.mxu0 0
  %429 = vmatmul.mubr.bf16.gmra.mrb[0].mxu0 %v187
  %v430 = vpop.f32.mrb[0].mxu0
  %v431 = vadd.f32 %v117, %v430
  %v432 = vpop.f32.mrb[0].mxu0
  %v433 = vpop.f32.mrb[0].mxu0
  %v434 = vadd.f32 %v117, %v433
  %v435 = vpop.f32.mrb[0].mxu0
  %436 = vmatprep.mubr.bf16.mxu0 0
  %437 = vmatmul.mubr.bf16.gmra.mrb[0].mxu0 %v190
  %v438 = vpop.f32.mrb[0].mxu0
  %v439 = vadd.f32 %v117, %v438
  %v440 = vpop.f32.mrb[0].mxu0
  %v441 = vpop.f32.mrb[0].mxu0
  %v442 = vadd.f32 %v117, %v441
  %v443 = vpop.f32.mrb[0].mxu0
  %444 = vmatprep.mubr.bf16.mxu0 0
  %445 = vmatmul.mubr.bf16.gmra.mrb[0].mxu0 %v193
  %v446 = vpop.f32.mrb[0].mxu0
  %v447 = vadd.f32 %v117, %v446
  %v448 = vpop.f32.mrb[0].mxu0
  %v449 = vpop.f32.mrb[0].mxu0
  %v450 = vadd.f32 %v117, %v449
  %v451 = vpop.f32.mrb[0].mxu0
  %452 = vmatprep.mubr.bf16.mxu0 0
  %453 = vmatmul.mubr.bf16.gmra.mrb[0].mxu0 %v196
  %v454 = vpop.f32.mrb[0].mxu0
  %v455 = vadd.f32 %v117, %v454
  %v456 = vpop.f32.mrb[0].mxu0
  %v457 = vpop.f32.mrb[0].mxu0
  %v458 = vadd.f32 %v117, %v457
  %v459 = vpop.f32.mrb[0].mxu0
  %460 = vmatprep.mubr.bf16.mxu0 0
  %461 = vmatmul.mubr.bf16.gmra.mrb[0].mxu0 %v199
  %v462 = vpop.f32.mrb[0].mxu0
  %v463 = vadd.f32 %v117, %v462
  %v464 = vpop.f32.mrb[0].mxu0
  %v465 = vpop.f32.mrb[0].mxu0
  %v466 = vadd.f32 %v117, %v465
  %v467 = vpop.f32.mrb[0].mxu0
  %468 = vmatprep.mubr.bf16.mxu0 0
  %469 = vmatmul.mubr.bf16.gmra.mrb[0].mxu0 %v202
  %v470 = vpop.f32.mrb[0].mxu0
  %v471 = vadd.f32 %v117, %v470
  %v472 = vpop.f32.mrb[0].mxu0
  %v473 = vpop.f32.mrb[0].mxu0
  %v474 = vadd.f32 %v117, %v473
  %v475 = vpop.f32.mrb[0].mxu0
  %476 = vmatprep.mubr.bf16.mxu0 0
  %477 = vmatmul.mubr.bf16.gmra.mrb[0].mxu0 %v205
  %v478 = vpop.f32.mrb[0].mxu0
  %v479 = vadd.f32 %v117, %v478
  %v480 = vpop.f32.mrb[0].mxu0
  %v481 = vpop.f32.mrb[0].mxu0
  %v482 = vadd.f32 %v117, %v481
  %v483 = vpop.f32.mrb[0].mxu0
  %484 = vmatprep.mubr.bf16.mxu0 0
  %485 = vmatmul.mubr.bf16.gmra.mrb[0].mxu0 %v208
  %v486 = vpop.f32.mrb[0].mxu0
  %v487 = vadd.f32 %v117, %v486
  %v488 = vpop.f32.mrb[0].mxu0
  %v489 = vpop.f32.mrb[0].mxu0
  %v490 = vadd.f32 %v117, %v489
  %v491 = vpop.f32.mrb[0].mxu0
  %492 = vmatprep.mubr.bf16.mxu0 0
  %493 = vmatmul.mubr.bf16.gmra.mrb[0].mxu0 %v211
  %v494 = vpop.f32.mrb[0].mxu0
  %v495 = vadd.f32 %v117, %v494
  %v496 = vpop.f32.mrb[0].mxu0
  %v497 = vpop.f32.mrb[0].mxu0
  %v498 = vadd.f32 %v117, %v497
  %v499 = vpop.f32.mrb[0].mxu0
  %500 = vmatprep.mubr.bf16.mxu0 0
  %501 = vmatmul.mubr.bf16.gmra.mrb[0].mxu0 %v214
  %v502 = vpop.f32.mrb[0].mxu0
  %v503 = vadd.f32 %v117, %v502
  %v504 = vpop.f32.mrb[0].mxu0
  %v505 = vpop.f32.mrb[0].mxu0
  %v506 = vadd.f32 %v117, %v505
  %v507 = vpop.f32.mrb[0].mxu0
  %508 = vdwg.mxu0
  %v509 = vpack.c.bf16 %v258, %v255
  %v510 = vpack.c.bf16 %v266, %v263
  %v511 = vpack.c.bf16 %v274, %v271
  %v512 = vpack.c.bf16 %v282, %v279
  %v513 = vpack.c.bf16 %v290, %v287
  %v514 = vpack.c.bf16 %v298, %v295
  %v515 = vpack.c.bf16 %v306, %v303
  %v516 = vpack.c.bf16 %v314, %v311
  %v517 = vpack.c.bf16 %v322, %v319
  %v518 = vpack.c.bf16 %v330, %v327
  %v519 = vpack.c.bf16 %v338, %v335
  %v520 = vpack.c.bf16 %v346, %v343
  %v521 = vpack.c.bf16 %v354, %v351
  %v522 = vpack.c.bf16 %v362, %v359
  %v523 = vpack.c.bf16 %v370, %v367
  %v524 = vpack.c.bf16 %v378, %v375
  %v525 = vpack.c.bf16 %v386, %v383
  %v526 = vpack.c.bf16 %v394, %v391
  %v527 = vpack.c.bf16 %v402, %v399
  %v528 = vpack.c.bf16 %v410, %v407
  %v529 = vpack.c.bf16 %v418, %v415
  %v530 = vpack.c.bf16 %v426, %v423
  %v531 = vpack.c.bf16 %v434, %v431
  %v532 = vpack.c.bf16 %v442, %v439
  %v533 = vpack.c.bf16 %v450, %v447
  %v534 = vpack.c.bf16 %v458, %v455
  %v535 = vpack.c.bf16 %v466, %v463
  %v536 = vpack.c.bf16 %v474, %v471
  %v537 = vpack.c.bf16 %v482, %v479
  %v538 = vpack.c.bf16 %v490, %v487
  %v539 = vpack.c.bf16 %v498, %v495
  %v540 = vpack.c.bf16 %v506, %v503
  %v573 = vunpack.c.l.b16 %v509
  %v574 = vunpack.c.h.b16 %v509
  %v575 = vunpack.c.l.b16 %v510
  %v576 = vunpack.c.h.b16 %v510
  %v577 = vunpack.c.l.b16 %v511
  %v578 = vunpack.c.h.b16 %v511
  %v579 = vunpack.c.l.b16 %v512
  %v580 = vunpack.c.h.b16 %v512
  %v581 = vunpack.c.l.b16 %v513
  %v582 = vunpack.c.h.b16 %v513
  %v583 = vunpack.c.l.b16 %v514
  %v584 = vunpack.c.h.b16 %v514
  %v585 = vunpack.c.l.b16 %v515
  %v586 = vunpack.c.h.b16 %v515
  %v587 = vunpack.c.l.b16 %v516
  %v588 = vunpack.c.h.b16 %v516
  %v589 = vunpack.c.l.b16 %v517
  %v590 = vunpack.c.h.b16 %v517
  %v591 = vunpack.c.l.b16 %v518
  %v592 = vunpack.c.h.b16 %v518
  %v593 = vunpack.c.l.b16 %v519
  %v594 = vunpack.c.h.b16 %v519
  %v595 = vunpack.c.l.b16 %v520
  %v596 = vunpack.c.h.b16 %v520
  %v597 = vunpack.c.l.b16 %v521
  %v598 = vunpack.c.h.b16 %v521
  %v599 = vunpack.c.l.b16 %v522
  %v600 = vunpack.c.h.b16 %v522
  %v601 = vunpack.c.l.b16 %v523
  %v602 = vunpack.c.h.b16 %v523
  %v603 = vunpack.c.l.b16 %v524
  %v604 = vunpack.c.h.b16 %v524
  %v605 = vunpack.c.l.b16 %v525
  %v606 = vunpack.c.h.b16 %v525
  %v607 = vunpack.c.l.b16 %v526
  %v608 = vunpack.c.h.b16 %v526
  %v609 = vunpack.c.l.b16 %v527
  %v610 = vunpack.c.h.b16 %v527
  %v611 = vunpack.c.l.b16 %v528
  %v612 = vunpack.c.h.b16 %v528
  %v613 = vunpack.c.l.b16 %v529
  %v614 = vunpack.c.h.b16 %v529
  %v615 = vunpack.c.l.b16 %v530
  %v616 = vunpack.c.h.b16 %v530
  %v617 = vunpack.c.l.b16 %v531
  %v618 = vunpack.c.h.b16 %v531
  %v619 = vunpack.c.l.b16 %v532
  %v620 = vunpack.c.h.b16 %v532
  %v621 = vunpack.c.l.b16 %v533
  %v622 = vunpack.c.h.b16 %v533
  %v623 = vunpack.c.l.b16 %v534
  %v624 = vunpack.c.h.b16 %v534
  %v625 = vunpack.c.l.b16 %v535
  %v626 = vunpack.c.h.b16 %v535
  %v627 = vunpack.c.l.b16 %v536
  %v628 = vunpack.c.h.b16 %v536
  %v629 = vunpack.c.l.b16 %v537
  %v630 = vunpack.c.h.b16 %v537
  %v631 = vunpack.c.l.b16 %v538
  %v632 = vunpack.c.h.b16 %v538
  %v633 = vunpack.c.l.b16 %v539
  %v634 = vunpack.c.h.b16 %v539
  %v635 = vunpack.c.l.b16 %v540
  %v636 = vunpack.c.h.b16 %v540
  %v637 = vpack.c.b16 %v573, %v573
  %v638 = vpack.c.b16 %v574, %v574
  %v639 = vpack.c.b16 %v575, %v575
  %v640 = vpack.c.b16 %v576, %v576
  %v641 = vpack.c.b16 %v577, %v577
  %v642 = vpack.c.b16 %v578, %v578
  %v643 = vpack.c.b16 %v579, %v579
  %v644 = vpack.c.b16 %v580, %v580
  %v645 = vpack.c.b16 %v581, %v581
  %v646 = vpack.c.b16 %v582, %v582
  %v647 = vpack.c.b16 %v583, %v583
  %v648 = vpack.c.b16 %v584, %v584
  %v649 = vpack.c.b16 %v585, %v585
  %v650 = vpack.c.b16 %v586, %v586
  %v651 = vpack.c.b16 %v587, %v587
  %v652 = vpack.c.b16 %v588, %v588
  %v653 = vpack.c.b16 %v589, %v589
  %v654 = vpack.c.b16 %v590, %v590
  %v655 = vpack.c.b16 %v591, %v591
  %v656 = vpack.c.b16 %v592, %v592
  %v657 = vpack.c.b16 %v593, %v593
  %v658 = vpack.c.b16 %v594, %v594
  %v659 = vpack.c.b16 %v595, %v595
  %v660 = vpack.c.b16 %v596, %v596
  %v661 = vpack.c.b16 %v597, %v597
  %v662 = vpack.c.b16 %v598, %v598
  %v663 = vpack.c.b16 %v599, %v599
  %v664 = vpack.c.b16 %v600, %v600
  %v665 = vpack.c.b16 %v601, %v601
  %v666 = vpack.c.b16 %v602, %v602
  %v667 = vpack.c.b16 %v603, %v603
  %v668 = vpack.c.b16 %v604, %v604
  %v669 = vpack.c.b16 %v605, %v605
  %v670 = vpack.c.b16 %v606, %v606
  %v671 = vpack.c.b16 %v607, %v607
  %v672 = vpack.c.b16 %v608, %v608
  %v673 = vpack.c.b16 %v609, %v609
  %v674 = vpack.c.b16 %v610, %v610
  %v675 = vpack.c.b16 %v611, %v611
  %v676 = vpack.c.b16 %v612, %v612
  %v677 = vpack.c.b16 %v613, %v613
  %v678 = vpack.c.b16 %v614, %v614
  %v679 = vpack.c.b16 %v615, %v615
  %v680 = vpack.c.b16 %v616, %v616
  %v681 = vpack.c.b16 %v617, %v617
  %v682 = vpack.c.b16 %v618, %v618
  %v683 = vpack.c.b16 %v619, %v619
  %v684 = vpack.c.b16 %v620, %v620
  %v685 = vpack.c.b16 %v621, %v621
  %v686 = vpack.c.b16 %v622, %v622
  %v687 = vpack.c.b16 %v623, %v623
  %v688 = vpack.c.b16 %v624, %v624
  %v689 = vpack.c.b16 %v625, %v625
  %v690 = vpack.c.b16 %v626, %v626
  %v691 = vpack.c.b16 %v627, %v627
  %v692 = vpack.c.b16 %v628, %v628
  %v693 = vpack.c.b16 %v629, %v629
  %v694 = vpack.c.b16 %v630, %v630
  %v695 = vpack.c.b16 %v631, %v631
  %v696 = vpack.c.b16 %v632, %v632
  %v697 = vpack.c.b16 %v633, %v633
  %v698 = vpack.c.b16 %v634, %v634
  %v699 = vpack.c.b16 %v635, %v635
  %v700 = vpack.c.b16 %v636, %v636
  %vm765 = vcmask 60416
  %766 = vst.msk [vmem:[%s3] sm:$0xf] %vm765, %v637
  %767 = vst.msk [vmem:[%s3 + $0x4] sm:$0xf] %vm765, %v638
  %768 = vst.msk [vmem:[%s3 + $0x8] sm:$0xf] %vm765, %v639
  %769 = vst.msk [vmem:[%s3 + $0xc] sm:$0xf] %vm765, %v640
  %770 = vst.msk [vmem:[%s3 + $0x10] sm:$0xf] %vm765, %v641
  %771 = vst.msk [vmem:[%s3 + $0x14] sm:$0xf] %vm765, %v642
  %772 = vst.msk [vmem:[%s3 + $0x18] sm:$0xf] %vm765, %v643
  %773 = vst.msk [vmem:[%s3 + $0x1c] sm:$0xf] %vm765, %v644
  %774 = vst.msk [vmem:[%s3 + $0x20] sm:$0xf] %vm765, %v645
  %775 = vst.msk [vmem:[%s3 + $0x24] sm:$0xf] %vm765, %v646
  %776 = vst.msk [vmem:[%s3 + $0x28] sm:$0xf] %vm765, %v647
  %777 = vst.msk [vmem:[%s3 + $0x2c] sm:$0xf] %vm765, %v648
  %778 = vst.msk [vmem:[%s3 + $0x30] sm:$0xf] %vm765, %v649
  %779 = vst.msk [vmem:[%s3 + $0x34] sm:$0xf] %vm765, %v650
  %780 = vst.msk [vmem:[%s3 + $0x38] sm:$0xf] %vm765, %v651
  %781 = vst.msk [vmem:[%s3 + $0x3c] sm:$0xf] %vm765, %v652
  %782 = vst.msk [vmem:[%s3 + $0x40] sm:$0xf] %vm765, %v653
  %783 = vst.msk [vmem:[%s3 + $0x44] sm:$0xf] %vm765, %v654
  %784 = vst.msk [vmem:[%s3 + $0x48] sm:$0xf] %vm765, %v655
  %785 = vst.msk [vmem:[%s3 + $0x4c] sm:$0xf] %vm765, %v656
  %786 = vst.msk [vmem:[%s3 + $0x50] sm:$0xf] %vm765, %v657
  %787 = vst.msk [vmem:[%s3 + $0x54] sm:$0xf] %vm765, %v658
  %788 = vst.msk [vmem:[%s3 + $0x58] sm:$0xf] %vm765, %v659
  %789 = vst.msk [vmem:[%s3 + $0x5c] sm:$0xf] %vm765, %v660
  %790 = vst.msk [vmem:[%s3 + $0x60] sm:$0xf] %vm765, %v661
  %791 = vst.msk [vmem:[%s3 + $0x64] sm:$0xf] %vm765, %v662
  %792 = vst.msk [vmem:[%s3 + $0x68] sm:$0xf] %vm765, %v663
  %793 = vst.msk [vmem:[%s3 + $0x6c] sm:$0xf] %vm765, %v664
  %794 = vst.msk [vmem:[%s3 + $0x70] sm:$0xf] %vm765, %v665
  %795 = vst.msk [vmem:[%s3 + $0x74] sm:$0xf] %vm765, %v666
  %796 = vst.msk [vmem:[%s3 + $0x78] sm:$0xf] %vm765, %v667
  %797 = vst.msk [vmem:[%s3 + $0x7c] sm:$0xf] %vm765, %v668
  %798 = vst.msk [vmem:[%s3 + $0x80] sm:$0xf] %vm765, %v669
  %799 = vst.msk [vmem:[%s3 + $0x84] sm:$0xf] %vm765, %v670
  %800 = vst.msk [vmem:[%s3 + $0x88] sm:$0xf] %vm765, %v671
  %801 = vst.msk [vmem:[%s3 + $0x8c] sm:$0xf] %vm765, %v672
  %802 = vst.msk [vmem:[%s3 + $0x90] sm:$0xf] %vm765, %v673
  %803 = vst.msk [vmem:[%s3 + $0x94] sm:$0xf] %vm765, %v674
  %804 = vst.msk [vmem:[%s3 + $0x98] sm:$0xf] %vm765, %v675
  %805 = vst.msk [vmem:[%s3 + $0x9c] sm:$0xf] %vm765, %v676
  %806 = vst.msk [vmem:[%s3 + $0xa0] sm:$0xf] %vm765, %v677
  %807 = vst.msk [vmem:[%s3 + $0xa4] sm:$0xf] %vm765, %v678
  %808 = vst.msk [vmem:[%s3 + $0xa8] sm:$0xf] %vm765, %v679
  %809 = vst.msk [vmem:[%s3 + $0xac] sm:$0xf] %vm765, %v680
  %810 = vst.msk [vmem:[%s3 + $0xb0] sm:$0xf] %vm765, %v681
  %811 = vst.msk [vmem:[%s3 + $0xb4] sm:$0xf] %vm765, %v682
  %812 = vst.msk [vmem:[%s3 + $0xb8] sm:$0xf] %vm765, %v683
  %813 = vst.msk [vmem:[%s3 + $0xbc] sm:$0xf] %vm765, %v684
  %814 = vst.msk [vmem:[%s3 + $0xc0] sm:$0xf] %vm765, %v685
  %815 = vst.msk [vmem:[%s3 + $0xc4] sm:$0xf] %vm765, %v686
  %816 = vst.msk [vmem:[%s3 + $0xc8] sm:$0xf] %vm765, %v687
  %817 = vst.msk [vmem:[%s3 + $0xcc] sm:$0xf] %vm765, %v688
  %818 = vst.msk [vmem:[%s3 + $0xd0] sm:$0xf] %vm765, %v689
  %819 = vst.msk [vmem:[%s3 + $0xd4] sm:$0xf] %vm765, %v690
  %820 = vst.msk [vmem:[%s3 + $0xd8] sm:$0xf] %vm765, %v691
  %821 = vst.msk [vmem:[%s3 + $0xdc] sm:$0xf] %vm765, %v692
  %822 = vst.msk [vmem:[%s3 + $0xe0] sm:$0xf] %vm765, %v693
  %823 = vst.msk [vmem:[%s3 + $0xe4] sm:$0xf] %vm765, %v694
  %824 = vst.msk [vmem:[%s3 + $0xe8] sm:$0xf] %vm765, %v695
  %825 = vst.msk [vmem:[%s3 + $0xec] sm:$0xf] %vm765, %v696
  %826 = vst.msk [vmem:[%s3 + $0xf0] sm:$0xf] %vm765, %v697
  %827 = vst.msk [vmem:[%s3 + $0xf4] sm:$0xf] %vm765, %v698
  %828 = vst.msk [vmem:[%s3 + $0xf8] sm:$0xf] %vm765, %v699
  %829 = vst.msk [vmem:[%s3 + $0xfc] sm:$0xf] %vm765, %v700
  // Predicated region
  $region14: #{tpu_custom_call.1} parent=0 // pred_check
    _
  $region15: #{tpu_custom_call.1} parent=0 // pred_check_branch
    %831 = sbr.rel (0) target = $region17
  $region16: #{tpu_custom_call.1} parent=0 // pred_region
    _
  $region17: #{tpu_custom_call.1} parent=0 // pred_fallthru
    _
  // Predicated region
  $region18: #{tpu_custom_call.1} parent=0 // pred_check
    _
  $region19: #{tpu_custom_call.1} parent=0 // pred_check_branch
    %833 = sbr.rel (0) target = $region21
  $region20: #{tpu_custom_call.1} parent=0 // pred_region
    _
  $region21: #{tpu_custom_call.1} parent=0 // pred_fallthru
    _

</llo_original>
